<compile_context>
chip_gen: v5e
topology: v5e:2x2
jax: 0.10.0
libtpu: 0.0.40
codegen_flags: <defaults>
</compile_context>

<pallas_src>
import jax
import jax.numpy as jnp
from jax import lax
from jax.experimental import pallas as pl
from jax.experimental.pallas import tpu as pltpu


_LANE = 128
_ROW_BYTES = 8192  # lane-dense row width: 8 KiB per row regardless of dtype


def _tile_budget_bytes() -> int:
    """Per-tile (single-buffer) byte budget, gated by TPU generation."""
    default = 8 * 1024 * 1024
    try:
        info = pltpu.get_tpu_info()
        vmem = int(getattr(info, "vmem_capacity_bytes", 0) or 0)
        if vmem > 0:
            # ~1/8 of physical VMEM per tile => ~1/4 with double buffering.
            # v5e/v6e (128 MiB): 16 MiB tile.  v7x (64 MiB/TC): 8 MiB tile.
            return min(16 * 1024 * 1024, max(4 * 1024 * 1024, vmem // 8))
    except Exception:
        pass
    return default


def _sum_kernel(tile_rows: int, cols: int, rows_per_iter: int):
    """Builds a kernel that reduces a (tile_rows, cols) tile to an (8, 128)
    f32 partial sum using only VALU vreg adds (accumulation always in f32)."""
    lane_groups = cols // _LANE
    sub_groups = rows_per_iter // 8
    n_iters = tile_rows // rows_per_iter

    def kernel(x_ref, o_ref):
        def body(r, acc):
            start = pl.multiple_of(r * rows_per_iter, rows_per_iter)
            chunk = x_ref[pl.ds(start, rows_per_iter), :].astype(jnp.float32)
            part = acc
            for s in range(sub_groups):
                for c in range(lane_groups):
                    part = part + chunk[s * 8:(s + 1) * 8,
                                        c * _LANE:(c + 1) * _LANE]
            return part

        acc = lax.fori_loop(0, n_iters, body,
                            jnp.zeros((8, _LANE), jnp.float32))
        o_ref[0] = acc

    return kernel


def weighted_mean_loss(per_elem_loss: jax.Array, weight: jax.Array,
                       *, tile_budget_bytes: int | None = None) -> jax.Array:
    """Computes weight * mean(per_elem_loss) with a Pallas TPU kernel.

    Accepts any shape; float32 and bfloat16 are streamed natively (anything
    else is cast to float32).  Returns a () float32 scalar.
    """
    x = jnp.asarray(per_elem_loss)
    if x.dtype not in (jnp.dtype(jnp.float32), jnp.dtype(jnp.bfloat16)):
        x = x.astype(jnp.float32)
    n = int(x.size)
    itemsize = x.dtype.itemsize
    cols = _ROW_BYTES // itemsize          # 2048 (f32) / 4096 (bf16)
    rows_per_iter = 32 // itemsize         # 8  (f32) / 16  (bf16): packed vreg rows
    budget = int(tile_budget_bytes or _tile_budget_bytes())

    # Logical (rows, cols) view of the flattened loss tensor.
    rows = -(-n // cols)
    rows = -(-rows // rows_per_iter) * rows_per_iter
    max_tile_rows = max(rows_per_iter,
                        (budget // _ROW_BYTES) // rows_per_iter * rows_per_iter)
    tile_rows = min(rows, max_tile_rows)
    rows = -(-rows // tile_rows) * tile_rows     # make the row-block tile divide
    padded = rows * cols

    flat = x.reshape(-1)
    if padded != n:
        # Zero padding cannot bias the sum; 1/N below uses the TRUE count.
        flat = jnp.pad(flat, (0, padded - n))
    x2d = flat.reshape(rows, cols)

    grid_rows = rows // tile_rows
    vmem_limit = int(min(48 * 1024 * 1024, max(24 * 1024 * 1024,
                                               2 * budget + 8 * 1024 * 1024)))

    partials = pl.pallas_call(
        _sum_kernel(tile_rows, cols, rows_per_iter),
        out_shape=jax.ShapeDtypeStruct((grid_rows, 8, _LANE), jnp.float32),
        grid=(grid_rows,),
        in_specs=[pl.BlockSpec((tile_rows, cols), lambda i: (i, 0))],
        out_specs=pl.BlockSpec((1, 8, _LANE), lambda i: (i, 0, 0)),
        compiler_params=pltpu.CompilerParams(
            # Row blocks are fully independent -> megacore-shardable on v7x.
            dimension_semantics=("parallel",),
            vmem_limit_bytes=vmem_limit,
        ),
        cost_estimate=pl.CostEstimate(
            flops=padded,
            transcendentals=0,
            bytes_accessed=padded * itemsize + grid_rows * 8 * _LANE * 4,
        ),
    )(x2d)

    # Tiny final reduce + weight/mean scaling in the wrapper (cheap vs. the
    # HBM stream), which keeps the kernel free of SMEM scalars / finalize.
    total = jnp.sum(partials)
    w = jnp.asarray(weight, jnp.float32)
    return w * total * jnp.float32(1.0 / n)


class PallasLoss:
    """JAX/Pallas mirror of the PyTorch `Loss` base module."""

    def __init__(self, weight: float = 1.0):
        # Mirrors register_buffer('weight', torch.as_tensor(weight, float)).
        self.weight = jnp.asarray(weight, dtype=jnp.float32)

    def scale(self, per_elem_loss: jax.Array) -> jax.Array:
        """weight * mean(per_elem_loss), computed in the Pallas kernel."""
        return weighted_mean_loss(per_elem_loss, self.weight)

    def forward(self, batch, output, optimization_mode):
        # Faithful to the reference: the base class does not define a loss.
        raise NotImplementedError()


if __name__ == "__main__":
    key = jax.random.PRNGKey(0)
    loss_mod = PallasLoss(weight=0.5)

    # Case 1: small 4-D activation-shaped loss tensor (exercises zero-padding
    # of an awkward size; 1/N uses the true element count).
    x1 = jax.random.normal(key, (2, 4, 16, 16), dtype=jnp.float32)
    r1 = jax.block_until_ready(loss_mod.scale(x1))
    ref1 = jnp.float32(0.5) * jnp.mean(x1)
    assert jnp.allclose(r1, ref1, rtol=1e-5, atol=1e-6), (r1, ref1)

    # Case 2: lane-dense f32 with a deliberately tiny tile budget, so the
    # grid has several independent ("parallel") row blocks.
    x2 = jax.random.normal(jax.random.PRNGKey(1), (64, 2048), dtype=jnp.float32)
    r2 = jax.block_until_ready(
        weighted_mean_loss(x2, loss_mod.weight, tile_budget_bytes=16 * 8192))
    ref2 = jnp.float32(0.5) * jnp.mean(x2)
    assert jnp.allclose(r2, ref2, rtol=1e-5, atol=1e-6), (r2, ref2)

    # Case 3: bfloat16 per-element loss (half the HBM bytes), f32 accumulation.
    x3 = jax.random.normal(jax.random.PRNGKey(2), (32, 4096),
                           dtype=jnp.float32).astype(jnp.bfloat16)
    r3 = jax.block_until_ready(loss_mod.scale(x3))
    ref3 = jnp.float32(0.5) * jnp.mean(x3.astype(jnp.float32))
    assert jnp.allclose(r3, ref3, rtol=2e-3, atol=2e-3), (r3, ref3)

    print("KERNEL_OK")
</pallas_src>

<mosaic_0001>
module attributes {stable_mosaic.version = 11 : i64} {
  func.func @kernel(%arg0: i32, %arg1: memref<8x2048xf32, #tpu.memory_space<vmem>>, %arg2: memref<1x8x128xf32, #tpu.memory_space<vmem>>) attributes {dimension_semantics = [#tpu.dimension_semantics<parallel>], iteration_bounds = array<i64: 1>, scalar_prefetch = 0 : i64, scratch_operands = 0 : i64, tpu.core_type = #tpu.core_type<tc>, window_params = [{transform_indices = @transform_0, window_bounds = array<i64: 8, 2048>}, {transform_indices = @transform_1, window_bounds = array<i64: 1, 8, 128>}]} {
    %cst = arith.constant 0.000000e+00 : f32
    %0 = vector.broadcast %cst : f32 to vector<8x128xf32>
    %c0_i32 = arith.constant 0 : i32
    %c8_i32 = arith.constant 8 : i32
    %1 = arith.muli %c0_i32, %c8_i32 : i32
    %2 = tpu.assume_multiple %1, 8 : i32
    %3 = arith.index_cast %2 : i32 to index
    %c0 = arith.constant 0 : index
    %4 = vector.load %arg1[%3, %c0] : memref<8x2048xf32, #tpu.memory_space<vmem>>, vector<8x2048xf32>
    %5 = vector.extract_strided_slice %4 {offsets = [0, 0], sizes = [8, 128], strides = [1, 1]} : vector<8x2048xf32> to vector<8x128xf32>
    %6 = arith.addf %0, %5 : vector<8x128xf32>
    %7 = vector.extract_strided_slice %4 {offsets = [0, 128], sizes = [8, 128], strides = [1, 1]} : vector<8x2048xf32> to vector<8x128xf32>
    %8 = arith.addf %6, %7 : vector<8x128xf32>
    %9 = vector.extract_strided_slice %4 {offsets = [0, 256], sizes = [8, 128], strides = [1, 1]} : vector<8x2048xf32> to vector<8x128xf32>
    %10 = arith.addf %8, %9 : vector<8x128xf32>
    %11 = vector.extract_strided_slice %4 {offsets = [0, 384], sizes = [8, 128], strides = [1, 1]} : vector<8x2048xf32> to vector<8x128xf32>
    %12 = arith.addf %10, %11 : vector<8x128xf32>
    %13 = vector.extract_strided_slice %4 {offsets = [0, 512], sizes = [8, 128], strides = [1, 1]} : vector<8x2048xf32> to vector<8x128xf32>
    %14 = arith.addf %12, %13 : vector<8x128xf32>
    %15 = vector.extract_strided_slice %4 {offsets = [0, 640], sizes = [8, 128], strides = [1, 1]} : vector<8x2048xf32> to vector<8x128xf32>
    %16 = arith.addf %14, %15 : vector<8x128xf32>
    %17 = vector.extract_strided_slice %4 {offsets = [0, 768], sizes = [8, 128], strides = [1, 1]} : vector<8x2048xf32> to vector<8x128xf32>
    %18 = arith.addf %16, %17 : vector<8x128xf32>
    %19 = vector.extract_strided_slice %4 {offsets = [0, 896], sizes = [8, 128], strides = [1, 1]} : vector<8x2048xf32> to vector<8x128xf32>
    %20 = arith.addf %18, %19 : vector<8x128xf32>
    %21 = vector.extract_strided_slice %4 {offsets = [0, 1024], sizes = [8, 128], strides = [1, 1]} : vector<8x2048xf32> to vector<8x128xf32>
    %22 = arith.addf %20, %21 : vector<8x128xf32>
    %23 = vector.extract_strided_slice %4 {offsets = [0, 1152], sizes = [8, 128], strides = [1, 1]} : vector<8x2048xf32> to vector<8x128xf32>
    %24 = arith.addf %22, %23 : vector<8x128xf32>
    %25 = vector.extract_strided_slice %4 {offsets = [0, 1280], sizes = [8, 128], strides = [1, 1]} : vector<8x2048xf32> to vector<8x128xf32>
    %26 = arith.addf %24, %25 : vector<8x128xf32>
    %27 = vector.extract_strided_slice %4 {offsets = [0, 1408], sizes = [8, 128], strides = [1, 1]} : vector<8x2048xf32> to vector<8x128xf32>
    %28 = arith.addf %26, %27 : vector<8x128xf32>
    %29 = vector.extract_strided_slice %4 {offsets = [0, 1536], sizes = [8, 128], strides = [1, 1]} : vector<8x2048xf32> to vector<8x128xf32>
    %30 = arith.addf %28, %29 : vector<8x128xf32>
    %31 = vector.extract_strided_slice %4 {offsets = [0, 1664], sizes = [8, 128], strides = [1, 1]} : vector<8x2048xf32> to vector<8x128xf32>
    %32 = arith.addf %30, %31 : vector<8x128xf32>
    %33 = vector.extract_strided_slice %4 {offsets = [0, 1792], sizes = [8, 128], strides = [1, 1]} : vector<8x2048xf32> to vector<8x128xf32>
    %34 = arith.addf %32, %33 : vector<8x128xf32>
    %35 = vector.extract_strided_slice %4 {offsets = [0, 1920], sizes = [8, 128], strides = [1, 1]} : vector<8x2048xf32> to vector<8x128xf32>
    %36 = arith.addf %34, %35 : vector<8x128xf32>
    %c1_i32 = arith.constant 1 : i32
    %c0_0 = arith.constant 0 : index
    %c0_1 = arith.constant 0 : index
    %c0_2 = arith.constant 0 : index
    %37 = vector.load %arg2[%c0_0, %c0_1, %c0_2] : memref<1x8x128xf32, #tpu.memory_space<vmem>>, vector<1x8x128xf32>
    %38 = vector.shape_cast %37 : vector<1x8x128xf32> to vector<8x128xf32>
    %39 = vector.shape_cast %36 : vector<8x128xf32> to vector<1x8x128xf32>
    tpu.vector_store %arg2[%c0_0, %c0_1, %c0_2], %39 {strides = array<i32>} : memref<1x8x128xf32, #tpu.memory_space<vmem>>, vector<1x8x128xf32>,
    return
  }
  func.func @transform_0(%arg0: i32) -> (i32, i32) {
    %c0_i32 = arith.constant 0 : i32
    %c0_i32_0 = arith.constant 0 : i32
    return %arg0, %c0_i32 : i32, i32
  }
  func.func @transform_1(%arg0: i32) -> (i32, i32, i32) {
    %c0_i32 = arith.constant 0 : i32
    %c0_i32_0 = arith.constant 0 : i32
    %c0_i32_1 = arith.constant 0 : i32
    return %arg0, %c0_i32, %c0_i32_0 : i32, i32, i32
  }
}

</mosaic_0001>

<llo_original>
// kernel: tpu_custom_call.1
$region0: #{tpu_custom_call.1}
  #allocation0 [shape = 'u32[]', space=smem, size = 0x4, offset = 0x4, fixed_abs, tag = 'smem constant byte address 0x4 - core index']
  #allocation1 [shape = 'u32[72,128]{1,0:T(1,128)}', space=vmem, size = 0x9000, scoped, tag = 'internal scratch']
  %s0 = inlined_call_operand.hbm [shape: f32[8,2048], index: 0, kind: input, shape index: {}]
  %s1 = inlined_call_operand.hbm [shape: f32[1,8,128], index: 1, kind: output, shape index: {}]
  %s2 = sld [smem:[#allocation0]]
  $region18: #{tpu_custom_call.1} parent=0
    _
  %s4 = ssub.s32 1, %s2
  %s5 = scalar_select 0, %s4, %s2
  $region1: #{tpu_custom_call.1} parent=0
    #allocation2 [shape = 'u8[65536]{0}', space=vmem, size = 0x10000, scoped, tag = 'input window, operand 0, single buffered']
    #allocation3 [shape = 's32[1]{0}', space=sflag, size = 0x4, scoped, tag = 'scoped memory for tpu_custom_call.1']
    #allocation4 [shape = 's32[1]{0}', space=sflag, size = 0x4, scoped, tag = 'scoped memory for tpu_custom_call.1']
    #allocation5 [shape = 'u8[4096]{0}', space=vmem, size = 0x1000, scoped, tag = 'output window, operand 0, single buffered']
    %6 = vsyncpa [#allocation3], 0
    %7 = vsyncpa [#allocation4], 0
    // Predicated region
    $region2: #{tpu_custom_call.1} parent=1 // pred_check
      _
    $region3: #{tpu_custom_call.1} parent=1 // pred_check_branch
      %9 = sbr.rel (0) target = $region5
    $region4: #{tpu_custom_call.1} parent=1 // pred_region
      %11 = vsyncadd [#allocation3], 0
      %s13 = sshll.u32 %s0, 4
      %s14 = int_to_ptr.hbm [resolvable:$true] %s13
      %s15 = sshll.u32 [#allocation2], 4
      %s16 = int_to_ptr.vmem [resolvable:$true] %s15
      %18 = dma.hbm_to_vmem [thread:$0]  %s14, 2048, %s16, [#allocation3]
    $region5: #{tpu_custom_call.1} parent=1 // pred_fallthru
      _
    // Predicated region
    $region6: #{tpu_custom_call.1} parent=1 // pred_check
      _
    $region7: #{tpu_custom_call.1} parent=1 // pred_check_branch
      %20 = sbr.rel (0) target = $region9
    $region8: #{tpu_custom_call.1} parent=1 // pred_region
      %22 = dma.done [#allocation3], 2048
    $region9: #{tpu_custom_call.1} parent=1 // pred_fallthru
      _
    %s23 = smul.u32 0, 16
    %s24 = smul.addr %s23, 8
    %s25 = scalar_lea.vmem [#allocation2], %s24
    %v26 = vld [vmem:[%s25] sm:$0xff]
    %v27 = vld [vmem:[%s25 + $0x8] sm:$0xff]
    %v28 = vld [vmem:[%s25 + $0x10] sm:$0xff]
    %v29 = vld [vmem:[%s25 + $0x18] sm:$0xff]
    %v30 = vld [vmem:[%s25 + $0x20] sm:$0xff]
    %v31 = vld [vmem:[%s25 + $0x28] sm:$0xff]
    %v32 = vld [vmem:[%s25 + $0x30] sm:$0xff]
    %v33 = vld [vmem:[%s25 + $0x38] sm:$0xff]
    %v34 = vld [vmem:[%s25 + $0x40] sm:$0xff]
    %v35 = vld [vmem:[%s25 + $0x48] sm:$0xff]
    %v36 = vld [vmem:[%s25 + $0x50] sm:$0xff]
    %v37 = vld [vmem:[%s25 + $0x58] sm:$0xff]
    %v38 = vld [vmem:[%s25 + $0x60] sm:$0xff]
    %v39 = vld [vmem:[%s25 + $0x68] sm:$0xff]
    %v40 = vld [vmem:[%s25 + $0x70] sm:$0xff]
    %v41 = vld [vmem:[%s25 + $0x78] sm:$0xff]
    %v42 = vadd.f32 %v26, 0.0
    %v43 = vadd.f32 %v42, %v27
    %v44 = vadd.f32 %v43, %v28
    %v45 = vadd.f32 %v44, %v29
    %v46 = vadd.f32 %v45, %v30
    %v47 = vadd.f32 %v46, %v31
    %v48 = vadd.f32 %v47, %v32
    %v49 = vadd.f32 %v48, %v33
    %v50 = vadd.f32 %v49, %v34
    %v51 = vadd.f32 %v50, %v35
    %v52 = vadd.f32 %v51, %v36
    %v53 = vadd.f32 %v52, %v37
    %v54 = vadd.f32 %v53, %v38
    %v55 = vadd.f32 %v54, %v39
    %v56 = vadd.f32 %v55, %v40
    %v57 = vadd.f32 %v56, %v41
    %58 = vst [vmem:[#allocation5] sm:$0xff] %v57
    // Predicated region
    $region10: #{tpu_custom_call.1} parent=1 // pred_check
      _
    $region11: #{tpu_custom_call.1} parent=1 // pred_check_branch
      %60 = sbr.rel (0) target = $region13
    $region12: #{tpu_custom_call.1} parent=1 // pred_region
      %62 = vsyncadd [#allocation4], 0
      %s64 = sshll.u32 [#allocation5], 4
      %s65 = int_to_ptr.vmem [resolvable:$true] %s64
      %s66 = sshll.u32 %s1, 4
      %s67 = int_to_ptr.hbm [resolvable:$true] %s66
      %69 = dma.vmem_to_hbm [thread:$0]  %s65, 128, %s67, [#allocation4]
    $region13: #{tpu_custom_call.1} parent=1 // pred_fallthru
      _
    // Predicated region
    $region14: #{tpu_custom_call.1} parent=1 // pred_check
      _
    $region15: #{tpu_custom_call.1} parent=1 // pred_check_branch
      %71 = sbr.rel (0) target = $region17
    $region16: #{tpu_custom_call.1} parent=1 // pred_region
      %73 = dma.done [#allocation4], 128
    $region17: #{tpu_custom_call.1} parent=1 // pred_fallthru
      _
    %74 = vsyncpa [#allocation3], 1
    %75 = vsyncpa [#allocation4], 1

</llo_original>
